<compile_context>
chip_gen: v7x
topology: tpu7x:2x2x1
jax: 0.10.0
libtpu: 0.0.40
codegen_flags: <defaults>
</compile_context>

<pallas_src>
import functools

import jax
import jax.numpy as jnp
from jax.experimental import pallas as pl
from jax.experimental.pallas import tpu as pltpu

_TWO_PI = 6.283185307179586
_INV_2_24 = 1.0 / 16777216.0  # 24-bit mantissa uniforms


def _gaussian_noise_kernel(x_ref, bits_ref, o_ref, *, sigma):
    """One (tile_rows, 128) tile: Box-Muller normals from raw bits, add, clamp."""
    half = x_ref.shape[0] // 2  # tile_rows is always even (multiple of 16)

    bits = bits_ref[...]
    # Two 24-bit uniforms per pair of outputs.
    u1 = (jnp.bitwise_and(bits[:half], 0xFFFFFF).astype(jnp.float32) + 1.0) \
        * jnp.float32(_INV_2_24)                                       # (0, 1]
    u2 = jnp.bitwise_and(bits[half:], 0xFFFFFF).astype(jnp.float32) \
        * jnp.float32(_INV_2_24)                                       # [0, 1)

    r = jnp.sqrt(-2.0 * jnp.log(u1))
    theta = jnp.float32(_TWO_PI) * u2
    z1 = r * jnp.cos(theta)   # standard normal, top half of the tile
    z2 = r * jnp.sin(theta)   # standard normal, bottom half (reuses r/theta)

    x = x_ref[...].astype(jnp.float32)
    s = jnp.float32(sigma)
    o_ref[:half, :] = jnp.clip(x[:half] + s * z1, 0.0, 1.0).astype(o_ref.dtype)
    o_ref[half:, :] = jnp.clip(x[half:] + s * z2, 0.0, 1.0).astype(o_ref.dtype)


def _round_up(n, m):
    return (n + m - 1) // m * m


def gaussian_noise(x, sigma, seed=0, *, tile_rows=1024):
    """Matches torch: (x + sigma * randn_like(x)).clamp(0, 1)."""
    orig_shape = x.shape
    orig_dtype = x.dtype
    total = int(x.size)
    lane = 128

    # Lane-dense 2D slab; tile rows capped by the actual data and kept a
    # multiple of 16 so the in-kernel half-split lands on sublane boundaries.
    rows_needed = max(-(-total // lane), 1)
    tr = min(_round_up(tile_rows, 16), _round_up(rows_needed, 16))
    rows = _round_up(rows_needed, tr)

    xf = jnp.ravel(x)
    pad = rows * lane - total
    if pad:
        xf = jnp.pad(xf, (0, pad))           # single pad, skipped when aligned
    x2 = xf.reshape(rows, lane)

    key = jax.random.PRNGKey(seed)
    bits = jax.random.bits(key, (rows, lane), dtype=jnp.uint32)

    n = rows * lane
    grid = (rows // tr,)

    out2 = pl.pallas_call(
        functools.partial(_gaussian_noise_kernel, sigma=float(sigma)),
        out_shape=jax.ShapeDtypeStruct((rows, lane), orig_dtype),
        grid=grid,
        in_specs=[pl.BlockSpec((tr, lane), lambda i: (i, 0)),   # x tile
                  pl.BlockSpec((tr, lane), lambda i: (i, 0))],  # random bits tile
        out_specs=pl.BlockSpec((tr, lane), lambda i: (i, 0)),
        compiler_params=pltpu.CompilerParams(
            dimension_semantics=("parallel",)),  # tiles independent -> megacore on v7x
        cost_estimate=pl.CostEstimate(
            flops=10 * n, transcendentals=2 * n, bytes_accessed=12 * n),
    )(x2, bits)

    out = out2.reshape(-1)
    if pad:
        out = out[:total]
    return out.reshape(orig_shape)


if __name__ == "__main__":
    key = jax.random.PRNGKey(0)
    # NCHW input, values in [0, 1) like a normalized image batch.
    x = jax.random.uniform(key, (2, 4, 16, 16), dtype=jnp.float32)

    sigma = 0.1
    y = gaussian_noise(x, sigma=sigma, seed=0)
    y = jax.block_until_ready(y)

    assert y.shape == x.shape and y.dtype == x.dtype
    assert bool(jnp.all((y >= 0.0) & (y <= 1.0)))
    # Noise should actually perturb the input.
    assert bool(jnp.any(jnp.abs(y - jnp.clip(x, 0.0, 1.0)) > 0.0))

    print("KERNEL_OK")
</pallas_src>

<mosaic_0001>
module attributes {stable_mosaic.version = 11 : i64} {
  func.func @_gaussian_noise_kernel(%arg0: i32, %arg1: memref<16x128xf32, #tpu.memory_space<vmem>>, %arg2: memref<16x128xi32, #tpu.memory_space<vmem>>, %arg3: memref<16x128xf32, #tpu.memory_space<vmem>>) attributes {dimension_semantics = [#tpu.dimension_semantics<parallel>], iteration_bounds = array<i64: 1>, scalar_prefetch = 0 : i64, scratch_operands = 0 : i64, tpu.core_type = #tpu.core_type<tc>, window_params = [{transform_indices = @transform_0, window_bounds = array<i64: 16, 128>}, {transform_indices = @transform_1, window_bounds = array<i64: 16, 128>}, {transform_indices = @transform_2, window_bounds = array<i64: 16, 128>}]} {
    %c0 = arith.constant 0 : index
    %c0_0 = arith.constant 0 : index
    %0 = vector.load %arg2[%c0, %c0_0] : memref<16x128xi32, #tpu.memory_space<vmem>>, vector<16x128xi32>
    %1 = vector.extract_strided_slice %0 {offsets = [0, 0], sizes = [8, 128], strides = [1, 1]} : vector<16x128xi32> to vector<8x128xi32>
    %c16777215_i32 = arith.constant 16777215 : i32
    %2 = vector.broadcast %c16777215_i32 : i32 to vector<8x128xi32>
    %3 = arith.andi %1, %2 : vector<8x128xi32>
    %4 = arith.uitofp %3 : vector<8x128xi32> to vector<8x128xf32>
    %cst = arith.constant 1.000000e+00 : f32
    %5 = vector.broadcast %cst : f32 to vector<8x128xf32>
    %6 = arith.addf %4, %5 : vector<8x128xf32>
    %cst_1 = arith.constant 5.96046448E-8 : f32
    %7 = vector.broadcast %cst_1 : f32 to vector<8x128xf32>
    %8 = arith.mulf %6, %7 : vector<8x128xf32>
    %9 = vector.extract_strided_slice %0 {offsets = [8, 0], sizes = [8, 128], strides = [1, 1]} : vector<16x128xi32> to vector<8x128xi32>
    %c16777215_i32_2 = arith.constant 16777215 : i32
    %10 = vector.broadcast %c16777215_i32_2 : i32 to vector<8x128xi32>
    %11 = arith.andi %9, %10 : vector<8x128xi32>
    %12 = arith.uitofp %11 : vector<8x128xi32> to vector<8x128xf32>
    %cst_3 = arith.constant 5.96046448E-8 : f32
    %13 = vector.broadcast %cst_3 : f32 to vector<8x128xf32>
    %14 = arith.mulf %12, %13 : vector<8x128xf32>
    %15 = math.log %8 : vector<8x128xf32>
    %cst_4 = arith.constant -2.000000e+00 : f32
    %16 = vector.broadcast %cst_4 : f32 to vector<8x128xf32>
    %17 = arith.mulf %16, %15 : vector<8x128xf32>
    %18 = math.sqrt %17 : vector<8x128xf32>
    %cst_5 = arith.constant 6.28318548 : f32
    %19 = vector.broadcast %cst_5 : f32 to vector<8x128xf32>
    %20 = arith.mulf %19, %14 : vector<8x128xf32>
    %21 = math.cos %20 : vector<8x128xf32>
    %22 = arith.mulf %18, %21 : vector<8x128xf32>
    %23 = math.sin %20 : vector<8x128xf32>
    %24 = arith.mulf %18, %23 : vector<8x128xf32>
    %c0_6 = arith.constant 0 : index
    %c0_7 = arith.constant 0 : index
    %25 = vector.load %arg1[%c0_6, %c0_7] : memref<16x128xf32, #tpu.memory_space<vmem>>, vector<16x128xf32>
    %26 = vector.extract_strided_slice %25 {offsets = [0, 0], sizes = [8, 128], strides = [1, 1]} : vector<16x128xf32> to vector<8x128xf32>
    %cst_8 = arith.constant 1.000000e-01 : f32
    %27 = vector.broadcast %cst_8 : f32 to vector<8x128xf32>
    %28 = arith.mulf %27, %22 : vector<8x128xf32>
    %29 = arith.addf %26, %28 : vector<8x128xf32>
    %cst_9 = arith.constant 0.000000e+00 : f32
    %cst_10 = arith.constant 1.000000e+00 : f32
    %30 = vector.broadcast %cst_9 : f32 to vector<8x128xf32>
    %31 = arith.maximumf %30, %29 : vector<8x128xf32>
    %32 = vector.broadcast %cst_10 : f32 to vector<8x128xf32>
    %33 = arith.minimumf %32, %31 : vector<8x128xf32>
    %c0_11 = arith.constant 0 : index
    %c0_12 = arith.constant 0 : index
    %34 = vector.load %arg3[%c0_11, %c0_12] : memref<16x128xf32, #tpu.memory_space<vmem>>, vector<8x128xf32>
    tpu.vector_store %arg3[%c0_11, %c0_12], %33 {strides = array<i32>} : memref<16x128xf32, #tpu.memory_space<vmem>>, vector<8x128xf32>,
    %35 = vector.extract_strided_slice %25 {offsets = [8, 0], sizes = [8, 128], strides = [1, 1]} : vector<16x128xf32> to vector<8x128xf32>
    %cst_13 = arith.constant 1.000000e-01 : f32
    %36 = vector.broadcast %cst_13 : f32 to vector<8x128xf32>
    %37 = arith.mulf %36, %24 : vector<8x128xf32>
    %38 = arith.addf %35, %37 : vector<8x128xf32>
    %cst_14 = arith.constant 0.000000e+00 : f32
    %cst_15 = arith.constant 1.000000e+00 : f32
    %39 = vector.broadcast %cst_14 : f32 to vector<8x128xf32>
    %40 = arith.maximumf %39, %38 : vector<8x128xf32>
    %41 = vector.broadcast %cst_15 : f32 to vector<8x128xf32>
    %42 = arith.minimumf %41, %40 : vector<8x128xf32>
    %c8 = arith.constant 8 : index
    %c0_16 = arith.constant 0 : index
    %43 = vector.load %arg3[%c8, %c0_16] : memref<16x128xf32, #tpu.memory_space<vmem>>, vector<8x128xf32>
    tpu.vector_store %arg3[%c8, %c0_16], %42 {strides = array<i32>} : memref<16x128xf32, #tpu.memory_space<vmem>>, vector<8x128xf32>,
    return
  }
  func.func @transform_0(%arg0: i32) -> (i32, i32) {
    %c0_i32 = arith.constant 0 : i32
    %c0_i32_0 = arith.constant 0 : i32
    return %arg0, %c0_i32 : i32, i32
  }
  func.func @transform_1(%arg0: i32) -> (i32, i32) {
    %c0_i32 = arith.constant 0 : i32
    %c0_i32_0 = arith.constant 0 : i32
    return %arg0, %c0_i32 : i32, i32
  }
  func.func @transform_2(%arg0: i32) -> (i32, i32) {
    %c0_i32 = arith.constant 0 : i32
    %c0_i32_0 = arith.constant 0 : i32
    return %arg0, %c0_i32 : i32, i32
  }
}

</mosaic_0001>

<llo_original>
// kernel: tpu_custom_call.1
$region0: #{tpu_custom_call.1}
  #allocation0 [shape = 'u32[]', space=smem, size = 0x4, offset = 0x4, fixed_abs, tag = 'smem constant byte address 0x4 - core index']
  #allocation1 [shape = 'u32[144,128]{1,0:T(1,128)}', space=vmem, size = 0x12000, scoped, tag = 'internal scratch']
  %s0 = inlined_call_operand.hbm [shape: f32[16,128], index: 0, kind: input, shape index: {}]
  %s1 = inlined_call_operand.hbm [shape: u32[16,128], index: 1, kind: input, shape index: {}]
  %s2 = inlined_call_operand.hbm [shape: f32[16,128], index: 2, kind: output, shape index: {}]
  %s3 = sld [smem:[#allocation0]]
  $region26: #{tpu_custom_call.1} parent=0
    _
  %s5 = ssub.s32 1, %s3
  %s6 = scalar_select 0, %s5, %s3
  $region1: #{tpu_custom_call.1} parent=0
    #allocation2 [shape = 'u8[8192]{0}', space=vmem, size = 0x2000, scoped, tag = 'input window, operand 0, single buffered']
    #allocation3 [shape = 's32[1]{0}', space=sflag, size = 0x4, scoped, tag = 'scoped memory for tpu_custom_call.1']
    #allocation4 [shape = 's32[1]{0}', space=sflag, size = 0x4, scoped, tag = 'scoped memory for tpu_custom_call.1']
    #allocation5 [shape = 'u8[8192]{0}', space=vmem, size = 0x2000, scoped, tag = 'input window, operand 1, single buffered']
    #allocation6 [shape = 's32[1]{0}', space=sflag, size = 0x4, scoped, tag = 'scoped memory for tpu_custom_call.1']
    #allocation7 [shape = 'u8[8192]{0}', space=vmem, size = 0x2000, scoped, tag = 'output window, operand 0, single buffered']
    %7 = vsyncpa [#allocation3], 0
    %8 = vsyncpa [#allocation6], 0
    %9 = vsyncpa [#allocation4], 0
    // Predicated region
    $region2: #{tpu_custom_call.1} parent=1 // pred_check
      _
    $region3: #{tpu_custom_call.1} parent=1 // pred_check_branch
      %11 = sbr.rel (0) target = $region5
    $region4: #{tpu_custom_call.1} parent=1 // pred_region
      %s13 = ssub.s32 256, 256
      %14 = vsyncadd [#allocation3], %s13
      %s15 = sshll.u32 [#allocation2], 4
      %s16 = int_to_ptr.vmem [resolvable:$true] %s15
      %21 = dma.hbm_to_vmem [thread:$0]  %s0, 256, %s16, [#allocation3], 128, 128, 8
    $region5: #{tpu_custom_call.1} parent=1 // pred_fallthru
      _
    // Predicated region
    $region6: #{tpu_custom_call.1} parent=1 // pred_check
      _
    $region7: #{tpu_custom_call.1} parent=1 // pred_check_branch
      %23 = sbr.rel (0) target = $region9
    $region8: #{tpu_custom_call.1} parent=1 // pred_region
      %s25 = ssub.s32 256, 256
      %26 = vsyncadd [#allocation6], %s25
      %s27 = sshll.u32 [#allocation5], 4
      %s28 = int_to_ptr.vmem [resolvable:$true] %s27
      %33 = dma.hbm_to_vmem [thread:$0]  %s1, 256, %s28, [#allocation6], 128, 128, 8
    $region9: #{tpu_custom_call.1} parent=1 // pred_fallthru
      _
    // Predicated region
    $region10: #{tpu_custom_call.1} parent=1 // pred_check
      _
    $region11: #{tpu_custom_call.1} parent=1 // pred_check_branch
      %35 = sbr.rel (0) target = $region13
    $region12: #{tpu_custom_call.1} parent=1 // pred_region
      %36 = dma.done [#allocation3], 256
    $region13: #{tpu_custom_call.1} parent=1 // pred_fallthru
      _
    // Predicated region
    $region14: #{tpu_custom_call.1} parent=1 // pred_check
      _
    $region15: #{tpu_custom_call.1} parent=1 // pred_check_branch
      %38 = sbr.rel (0) target = $region17
    $region16: #{tpu_custom_call.1} parent=1 // pred_region
      %39 = dma.done [#allocation6], 256
    $region17: #{tpu_custom_call.1} parent=1 // pred_fallthru
      _
    %v40 = vld [vmem:[#allocation5] sm:$0xff]
    %v41 = vld [vmem:[#allocation5 + $0x8] sm:$0xff]
    %v42 = vand.u32 %v40, 16777215
    %v43 = vshrl.u32 %v42, 16
    %v44 = vand.u32 %v42, 65535
    %v45 = vcvt.s32.f32 %v43
    %v46 = vmul.f32 %v45, 65536.0
    %v47 = vcvt.s32.f32 %v44
    %v48 = vadd.f32 %v46, %v47
    %v49 = vadd.f32 %v48, 1.0
    %v50 = vmul.f32 %v49, 5.9604645e-08
    %v51 = vand.u32 %v41, 16777215
    %v52 = vshrl.u32 %v51, 16
    %v53 = vand.u32 %v51, 65535
    %v54 = vcvt.s32.f32 %v52
    %v55 = vmul.f32 %v54, 65536.0
    %v56 = vcvt.s32.f32 %v53
    %v57 = vadd.f32 %v55, %v56
    %v58 = vmul.f32 %v57, 5.9604645e-08
    %v59 = vlog2.pop %v50
    %v60 = vmul.f32 %v59, 0.6931472
    %v61 = vmul.f32 %v60, -2.0
    %v62 = vrsqrt.pop %v61
    %v63 = vmul.f32 %v61, %v62
    %vm64 = vcmp.eq.f32.partialorder %v61, inf
    %v65 = vsel %vm64, %v61, %v63
    %vm66 = vcmp.eq.f32.partialorder %v61, 0.0
    %v67 = vand.u32 %v61, 2147483648
    %v68 = vsel %vm66, %v67, %v65
    %v69 = vmul.f32 %v58, 6.2831855
    %v70 = vand.u32 2147483647, %v69
    %vm71 = vcmp.le.f32.partialorder %v70, 0.7853982
    %vm72 = vcmp.lt.s32.totalorder %v69, 0
    %v73 = vand.u32 %v69, 2139095040
    %v74 = vshrl.u32 %v73, 23
    %v75 = vsub.s32 %v74, 127
    %v76 = vand.u32 2147483647, %v69
    %v77 = vand.u32 %v76, 8388607
    %v78 = vor.u32 %v77, 8388608
    %v79 = vsub.s32 0, %v78
    %v80 = vadd.s32 %v75, 1
    %vm81 = vcmp.gt.s32.totalorder %v80, 0
    %v82 = vsel %vm81, %v80, 0
    %v83 = vshrl.u32 %v82, 5
    %v84 = vand.u32 %v82, 31
    %v85 = vsub.s32 32, %v84
    %v86 = vshrl.u32 683565275, %v85
    %v87 = vshll.u32 683565275, %v84
    %v88 = vshrl.u32 2475754826, %v85
    %v89 = vor.u32 %v87, %v88
    %v90 = vshll.u32 2475754826, %v84
    %v91 = vshrl.u32 2131351028, %v85
    %v92 = vor.u32 %v90, %v91
    %v93 = vshll.u32 2131351028, %v84
    %v94 = vshrl.u32 2102212464, %v85
    %v95 = vor.u32 %v93, %v94
    %v96 = vshll.u32 2102212464, %v84
    %v97 = vshrl.u32 920167782, %v85
    %v98 = vor.u32 %v96, %v97
    %v99 = vshll.u32 920167782, %v84
    %v100 = vshrl.u32 1326507024, %v85
    %v101 = vor.u32 %v99, %v100
    %vm102 = vcmp.lt.s32.totalorder %v83, 1
    %vm103 = vcmp.lt.s32.totalorder %v83, 2
    %vm104 = vcmp.lt.s32.totalorder %v83, 3
    %vm105 = vcmp.lt.s32.totalorder %v83, 4
    %v106 = vsel %vm102, %v86, %v89
    %v107 = vsel %vm105, %v95, 2102212464
    %v108 = vsel %vm104, %v92, %v107
    %v109 = vsel %vm103, %v106, %v108
    %v110 = vsel %vm102, %v89, %v92
    %v111 = vsel %vm105, %v98, 920167782
    %v112 = vsel %vm104, %v95, %v111
    %v113 = vsel %vm103, %v110, %v112
    %v114 = vsel %vm102, %v92, %v95
    %v115 = vsel %vm105, %v101, 1326507024
    %v116 = vsel %vm104, %v98, %v115
    %v117 = vsel %vm103, %v114, %v116
    %v118 = vshll.u32 %v78, 8
    %v119 = vmul.u32.u64.compose %v118, %v117
    %v120 = vextract.low.u32 %v119
    %v121 = vextract.high.u32 %v119
    %v122 = vmul.u32.u64.compose %v118, %v113
    %v123 = vextract.low.u32 %v122
    %v124 = vextract.high.u32 %v122
    %v125 = vmul.u32 %v118, %v109
    %v126 = vadd.s32 %v121, %v123
    %vm127 = vc.u32 %v121, %v123
    %v128 = vadd.s32 %v124, 1
    %v129 = vsel %vm127, %v128, %v124
    %v130 = vadd.s32 %v125, %v129
    %v131 = vadd.s32 %v130, 536870912
    %v132 = vshrl.u32 %v131, 30
    %v133 = vshll.u32 %v132, 30
    %v134 = vsub.s32 %v130, %v133
    %vm135 = vcmp.lt.s32.totalorder %v134, 0
    %v136 = vsub.s32 0, %v134
    %v137 = vsel %vm135, %v136, %v134
    %v138 = vclz %v137
    %v139 = vsub.s32 %v138, 2
    %vm140 = vcmp.gt.s32.totalorder 0, %v139
    %v141 = vsel %vm140, 0, %v139
    %v142 = vsub.s32 32, %v141
    %v143 = vshll.u32 %v134, %v141
    %v144 = vshrl.u32 %v126, %v142
    %v145 = vor.u32 %v143, %v144
    %v146 = vsub.s32 4294967266, %v141
    %v147 = vadd.s32 %v146, 127
    %v148 = vshll.u32 %v147, 23
    %v149 = vor.u32 4788187, %v148
    %v150 = vand.u32 2147483647, %v149
    %v152 = vcvt.s32.f32 %v145
    %v153 = vmul.f32 %v152, %v150
    %v154 = vxor.u32 %v153, 2147483648
    %v155 = vsel %vm72, %v154, %v153
    %v156 = vsub.s32 4, %v132
    %v157 = vsel %vm72, %v156, %v132
    %v158 = vsel %vm71, %v69, %v155
    %v159 = vsel %vm71, 0, %v157
    %v160 = vcosq.f32.pop %v158
    %v161 = vsinq.f32.pop %v158
    %vm162 = vweird.f32 %v69
    %v163 = vand.u32 %v159, 3
    %vm164 = vcmp.lt.s32.totalorder %v163, 2
    %vm165 = vcmp.eq.s32.totalorder %v163, 0
    %v166 = vxor.u32 %v161, 2147483648
    %v167 = vsel %vm165, %v160, %v166
    %vm168 = vcmp.eq.s32.totalorder %v163, 2
    %v169 = vxor.u32 %v160, 2147483648
    %v170 = vsel %vm168, %v169, %v161
    %v171 = vsel %vm164, %v167, %v170
    %v172 = vsel %vm162, nan, %v171
    %v173 = vmul.f32 %v68, %v172
    %v174 = vand.u32 2147483647, %v69
    %vm175 = vcmp.le.f32.partialorder %v174, 0.7853982
    %vm176 = vcmp.lt.s32.totalorder %v69, 0
    %v177 = vand.u32 %v69, 2139095040
    %v178 = vshrl.u32 %v177, 23
    %v179 = vsub.s32 %v178, 127
    %v180 = vand.u32 2147483647, %v69
    %v181 = vand.u32 %v180, 8388607
    %v182 = vor.u32 %v181, 8388608
    %v183 = vsub.s32 0, %v182
    %v184 = vadd.s32 %v179, 1
    %vm185 = vcmp.gt.s32.totalorder %v184, 0
    %v186 = vsel %vm185, %v184, 0
    %v187 = vshrl.u32 %v186, 5
    %v188 = vand.u32 %v186, 31
    %v189 = vsub.s32 32, %v188
    %v190 = vshrl.u32 683565275, %v189
    %v191 = vshll.u32 683565275, %v188
    %v192 = vshrl.u32 2475754826, %v189
    %v193 = vor.u32 %v191, %v192
    %v194 = vshll.u32 2475754826, %v188
    %v195 = vshrl.u32 2131351028, %v189
    %v196 = vor.u32 %v194, %v195
    %v197 = vshll.u32 2131351028, %v188
    %v198 = vshrl.u32 2102212464, %v189
    %v199 = vor.u32 %v197, %v198
    %v200 = vshll.u32 2102212464, %v188
    %v201 = vshrl.u32 920167782, %v189
    %v202 = vor.u32 %v200, %v201
    %v203 = vshll.u32 920167782, %v188
    %v204 = vshrl.u32 1326507024, %v189
    %v205 = vor.u32 %v203, %v204
    %vm206 = vcmp.lt.s32.totalorder %v187, 1
    %vm207 = vcmp.lt.s32.totalorder %v187, 2
    %vm208 = vcmp.lt.s32.totalorder %v187, 3
    %vm209 = vcmp.lt.s32.totalorder %v187, 4
    %v210 = vsel %vm206, %v190, %v193
    %v211 = vsel %vm209, %v199, 2102212464
    %v212 = vsel %vm208, %v196, %v211
    %v213 = vsel %vm207, %v210, %v212
    %v214 = vsel %vm206, %v193, %v196
    %v215 = vsel %vm209, %v202, 920167782
    %v216 = vsel %vm208, %v199, %v215
    %v217 = vsel %vm207, %v214, %v216
    %v218 = vsel %vm206, %v196, %v199
    %v219 = vsel %vm209, %v205, 1326507024
    %v220 = vsel %vm208, %v202, %v219
    %v221 = vsel %vm207, %v218, %v220
    %v222 = vshll.u32 %v182, 8
    %v223 = vmul.u32.u64.compose %v222, %v221
    %v224 = vextract.low.u32 %v223
    %v225 = vextract.high.u32 %v223
    %v226 = vmul.u32.u64.compose %v222, %v217
    %v227 = vextract.low.u32 %v226
    %v228 = vextract.high.u32 %v226
    %v229 = vmul.u32 %v222, %v213
    %v230 = vadd.s32 %v225, %v227
    %vm231 = vc.u32 %v225, %v227
    %v232 = vadd.s32 %v228, 1
    %v233 = vsel %vm231, %v232, %v228
    %v234 = vadd.s32 %v229, %v233
    %v235 = vadd.s32 %v234, 536870912
    %v236 = vshrl.u32 %v235, 30
    %v237 = vshll.u32 %v236, 30
    %v238 = vsub.s32 %v234, %v237
    %vm239 = vcmp.lt.s32.totalorder %v238, 0
    %v240 = vsub.s32 0, %v238
    %v241 = vsel %vm239, %v240, %v238
    %v242 = vclz %v241
    %v243 = vsub.s32 %v242, 2
    %vm244 = vcmp.gt.s32.totalorder 0, %v243
    %v245 = vsel %vm244, 0, %v243
    %v246 = vsub.s32 32, %v245
    %v247 = vshll.u32 %v238, %v245
    %v248 = vshrl.u32 %v230, %v246
    %v249 = vor.u32 %v247, %v248
    %v250 = vsub.s32 4294967266, %v245
    %v251 = vadd.s32 %v250, 127
    %v252 = vshll.u32 %v251, 23
    %v253 = vor.u32 4788187, %v252
    %v254 = vand.u32 2147483647, %v253
    %v256 = vcvt.s32.f32 %v249
    %v257 = vmul.f32 %v256, %v254
    %v258 = vxor.u32 %v257, 2147483648
    %v259 = vsel %vm176, %v258, %v257
    %v260 = vsub.s32 4, %v236
    %v261 = vsel %vm176, %v260, %v236
    %v262 = vsel %vm175, %v69, %v259
    %v263 = vsel %vm175, 0, %v261
    %v264 = vcosq.f32.pop %v262
    %v265 = vsinq.f32.pop %v262
    %vm266 = vweird.f32 %v69
    %v267 = vadd.s32 %v263, 3
    %v268 = vand.u32 %v267, 3
    %vm269 = vcmp.lt.s32.totalorder %v268, 2
    %vm270 = vcmp.eq.s32.totalorder %v268, 0
    %v271 = vxor.u32 %v265, 2147483648
    %v272 = vsel %vm270, %v264, %v271
    %vm273 = vcmp.eq.s32.totalorder %v268, 2
    %v274 = vxor.u32 %v264, 2147483648
    %v275 = vsel %vm273, %v274, %v265
    %v276 = vsel %vm269, %v272, %v275
    %v277 = vsel %vm266, nan, %v276
    %v278 = vmul.f32 %v68, %v277
    %v279 = vld [vmem:[#allocation2] sm:$0xff]
    %v280 = vld [vmem:[#allocation2 + $0x8] sm:$0xff]
    %v281 = vmul.f32 %v173, 0.1
    %v282 = vadd.f32 %v279, %v281
    %v283 = vmax.f32 %v282, 0.0
    %v284 = vmin.f32 %v283, 1.0
    %285 = vst [vmem:[#allocation7] sm:$0xff] %v284
    %v286 = vmul.f32 %v278, 0.1
    %v287 = vadd.f32 %v280, %v286
    %v288 = vmax.f32 %v287, 0.0
    %v289 = vmin.f32 %v288, 1.0
    %290 = vst [vmem:[#allocation7 + $0x8] sm:$0xff] %v289
    // Predicated region
    $region18: #{tpu_custom_call.1} parent=1 // pred_check
      _
    $region19: #{tpu_custom_call.1} parent=1 // pred_check_branch
      %292 = sbr.rel (0) target = $region21
    $region20: #{tpu_custom_call.1} parent=1 // pred_region
      %s294 = ssub.s32 256, 256
      %295 = vsyncadd [#allocation4], %s294
      %s296 = sshll.u32 [#allocation7], 4
      %s297 = int_to_ptr.vmem [resolvable:$true] %s296
      %302 = dma.vmem_to_hbm [thread:$0]  %s297, 256, %s2, [#allocation4], 128, 128, 8
    $region21: #{tpu_custom_call.1} parent=1 // pred_fallthru
      _
    // Predicated region
    $region22: #{tpu_custom_call.1} parent=1 // pred_check
      _
    $region23: #{tpu_custom_call.1} parent=1 // pred_check_branch
      %304 = sbr.rel (0) target = $region25
    $region24: #{tpu_custom_call.1} parent=1 // pred_region
      %305 = dma.done [#allocation4], 256
    $region25: #{tpu_custom_call.1} parent=1 // pred_fallthru
      _
    %306 = vsyncpa [#allocation3], 1
    %307 = vsyncpa [#allocation6], 1
    %308 = vsyncpa [#allocation4], 1

</llo_original>
